<compile_context>
chip_gen: v5e
topology: v5e:2x2
jax: 0.10.0
libtpu: 0.0.40
codegen_flags: <defaults>
</compile_context>

<pallas_src>
import math

import jax
import jax.numpy as jnp
from jax.experimental import pallas as pl
from jax.experimental.pallas import tpu as pltpu

_LANES = 128          # vreg lane width
_BOOL_SUBLANES = 32   # 8-bit packed (bool) tile granularity in the sublane dim


def _elementwise_kernel(x1_ref, x2_ref, x3_ref, x4_ref, x5_ref,
                        add_ref, sub_ref, mul_ref, div_ref,
                        gt_ref, lt_ref, eq_ref):
    x1 = x1_ref[...]
    x2 = x2_ref[...]
    x3 = x3_ref[...]
    x4 = x4_ref[...]
    x5 = x5_ref[...]

    add_ref[...] = x1 + x2
    sub_ref[...] = x3 - x4
    mul_ref[...] = x1 * x2
    # Exact VPU divide keeps bit-parity with the torch reference; the kernel is
    # HBM-bound so the VALU cost is fully hidden (pl.reciprocal(approx=True)
    # would only trade accuracy for nothing).
    div_ref[...] = x5 / (x2 + 1e-08)
    # Masks emitted in their final bool dtype inside the kernel (no extra
    # wrapper-side cast passes over HBM).
    gt_ref[...] = x1 > x3
    lt_ref[...] = x4 < x5
    eq_ref[...] = x1 == x2


def _ceil_to(a, m):
    return -(-a // m) * m


def pt_module_forward(x1, x2, x3, x4, x5, *, max_tile_rows=2048,
                      min_pallas_elems=1 << 20):
    """Forward pass of PtModule as a single tiled, pipelined pallas_call."""
    assert x1.shape == x2.shape == x3.shape == x4.shape == x5.shape
    shape = x1.shape
    fdtype = x1.dtype
    n = math.prod(shape)

    # Tiny-input fallback: one fused XLA pass beats the pallas_call fixed
    # launch + per-step DMA overhead for small n.
    if n < min_pallas_elems:
        return (x1 + x2, x3 - x4, x1 * x2, x5 / (x2 + 1e-08),
                x1 > x3, x4 < x5, x1 == x2)

    # Lane-dense (rows, 128) layout.  When n % 128 == 0 this is a free
    # metadata reshape (no pad, no extra HBM pass).  Otherwise only the final
    # partial row is padded; allow_input_fusion lets XLA fuse that pad into
    # the pallas_call operands instead of materializing padded copies.
    pad_cols = (-n) % _LANES
    padded_n = n + pad_cols
    rows = padded_n // _LANES

    def to_2d(x):
        flat = x.reshape(-1)
        if pad_cols:
            flat = jnp.pad(flat, (0, pad_cols))
        return flat.reshape(rows, _LANES)

    ins = [to_2d(x) for x in (x1, x2, x3, x4, x5)]

    # Tile selection: the biggest tile that fits comfortably in scoped VMEM,
    # but always >= 2 grid steps when there is enough work so that
    # dimension_semantics=("parallel",) can shard the grid across v7x's two
    # TensorCores.  tile_rows is a multiple of 32 in the multi-tile branch so
    # interior bool stores are unmasked full vsts; the ragged final block (if
    # any) is handled by Pallas's masked DMAs.
    if rows < 2 * _BOOL_SUBLANES:
        tile_rows = rows                                   # full-dim block
    else:
        tile_rows = min(max_tile_rows,
                        _ceil_to(pl.cdiv(rows, 2), _BOOL_SUBLANES))
    num_tiles = pl.cdiv(rows, tile_rows)

    blk = pl.BlockSpec((tile_rows, _LANES), lambda i: (i, 0))

    out_shapes = (
        jax.ShapeDtypeStruct((rows, _LANES), fdtype),      # addition
        jax.ShapeDtypeStruct((rows, _LANES), fdtype),      # subtraction
        jax.ShapeDtypeStruct((rows, _LANES), fdtype),      # multiplication
        jax.ShapeDtypeStruct((rows, _LANES), fdtype),      # division
        jax.ShapeDtypeStruct((rows, _LANES), jnp.bool_),   # greater_than
        jax.ShapeDtypeStruct((rows, _LANES), jnp.bool_),   # less_than
        jax.ShapeDtypeStruct((rows, _LANES), jnp.bool_),   # equal_to
    )

    # Per-step working set: 5 f32 in + 4 f32 out + 3 bool out = 39 B/row-elem,
    # double-buffered by the pipeline.  Set the scoped-VMEM limit explicitly
    # (v5e's 16 MiB default would otherwise bind) while staying well below
    # v7x's 64 MiB physical VMEM.
    per_step_bytes = tile_rows * _LANES * (5 * 4 + 4 * 4 + 3 * 1)
    vmem_limit = max(32 << 20,
                     min(int(2.5 * per_step_bytes) + (4 << 20), 56 << 20))

    outs = pl.pallas_call(
        _elementwise_kernel,
        out_shape=out_shapes,
        grid=(num_tiles,),
        in_specs=[blk] * 5,
        out_specs=[blk] * 7,
        compiler_params=pltpu.CompilerParams(
            # Row-tiles are independent: v7x's two TensorCores split the grid;
            # harmless on single-core v5e/v6e.
            dimension_semantics=("parallel",),
            vmem_limit_bytes=vmem_limit,
            allow_input_fusion=[True] * 5 if pad_cols else None,
        ),
        # Advisory only: helps XLA schedule around the custom call.
        cost_estimate=pl.CostEstimate(flops=8 * padded_n,
                                      transcendentals=0,
                                      bytes_accessed=39 * padded_n),
    )(*ins)

    def from_2d(o):
        flat = o.reshape(-1)
        if pad_cols:
            flat = flat[:n]
        return flat.reshape(shape)

    return tuple(from_2d(o) for o in outs)


if __name__ == "__main__":
    key = jax.random.PRNGKey(0)
    k1, k2, k3, k4, k5 = jax.random.split(key, 5)
    shape = (2, 4, 16, 16)
    x1 = jax.random.normal(k1, shape, dtype=jnp.float32)
    x2 = jax.random.normal(k2, shape, dtype=jnp.float32)
    x3 = jax.random.normal(k3, shape, dtype=jnp.float32)
    x4 = jax.random.normal(k4, shape, dtype=jnp.float32)
    x5 = jax.random.normal(k5, shape, dtype=jnp.float32)

    # Disable the tiny-input fallback so the Pallas kernel path is exercised
    # at this small test shape.
    fwd = jax.jit(lambda a, b, c, d, e:
                  pt_module_forward(a, b, c, d, e, min_pallas_elems=0))
    outs = jax.block_until_ready(fwd(x1, x2, x3, x4, x5))

    # Reference check in plain JAX.
    ref = (
        x1 + x2,
        x3 - x4,
        x1 * x2,
        x5 / (x2 + 1e-08),
        x1 > x3,
        x4 < x5,
        x1 == x2,
    )
    import numpy as np
    for i, (o, r) in enumerate(zip(outs, ref)):
        o_np, r_np = np.asarray(o), np.asarray(r)
        if r_np.dtype == np.bool_:
            assert o_np.dtype == r_np.dtype and np.array_equal(o_np, r_np), \
                f"bool output {i} mismatch"
        else:
            np.testing.assert_allclose(o_np, r_np, rtol=1e-6, atol=1e-6)

    print("KERNEL_OK")
</pallas_src>

<mosaic_0001>
module attributes {stable_mosaic.version = 11 : i64} {
  func.func @_elementwise_kernel(%arg0: i32, %arg1: memref<16x128xf32, #tpu.memory_space<vmem>>, %arg2: memref<16x128xf32, #tpu.memory_space<vmem>>, %arg3: memref<16x128xf32, #tpu.memory_space<vmem>>, %arg4: memref<16x128xf32, #tpu.memory_space<vmem>>, %arg5: memref<16x128xf32, #tpu.memory_space<vmem>>, %arg6: memref<16x128xf32, #tpu.memory_space<vmem>>, %arg7: memref<16x128xf32, #tpu.memory_space<vmem>>, %arg8: memref<16x128xf32, #tpu.memory_space<vmem>>, %arg9: memref<16x128xf32, #tpu.memory_space<vmem>>, %arg10: memref<16x128xi32, #tpu.memory_space<vmem>>, %arg11: memref<16x128xi32, #tpu.memory_space<vmem>>, %arg12: memref<16x128xi32, #tpu.memory_space<vmem>>) attributes {dimension_semantics = [#tpu.dimension_semantics<parallel>], iteration_bounds = array<i64: 1>, scalar_prefetch = 0 : i64, scratch_operands = 0 : i64, tpu.core_type = #tpu.core_type<tc>, window_params = [{transform_indices = @transform_0, window_bounds = array<i64: 16, 128>}, {transform_indices = @transform_1, window_bounds = array<i64: 16, 128>}, {transform_indices = @transform_2, window_bounds = array<i64: 16, 128>}, {transform_indices = @transform_3, window_bounds = array<i64: 16, 128>}, {transform_indices = @transform_4, window_bounds = array<i64: 16, 128>}, {transform_indices = @transform_5, window_bounds = array<i64: 16, 128>}, {transform_indices = @transform_6, window_bounds = array<i64: 16, 128>}, {transform_indices = @transform_7, window_bounds = array<i64: 16, 128>}, {transform_indices = @transform_8, window_bounds = array<i64: 16, 128>}, {transform_indices = @transform_9, window_bounds = array<i64: 16, 128>}, {transform_indices = @transform_10, window_bounds = array<i64: 16, 128>}, {transform_indices = @transform_11, window_bounds = array<i64: 16, 128>}]} {
    %c0 = arith.constant 0 : index
    %c0_0 = arith.constant 0 : index
    %0 = vector.load %arg1[%c0, %c0_0] : memref<16x128xf32, #tpu.memory_space<vmem>>, vector<16x128xf32>
    %c0_1 = arith.constant 0 : index
    %c0_2 = arith.constant 0 : index
    %1 = vector.load %arg2[%c0_1, %c0_2] : memref<16x128xf32, #tpu.memory_space<vmem>>, vector<16x128xf32>
    %c0_3 = arith.constant 0 : index
    %c0_4 = arith.constant 0 : index
    %2 = vector.load %arg3[%c0_3, %c0_4] : memref<16x128xf32, #tpu.memory_space<vmem>>, vector<16x128xf32>
    %c0_5 = arith.constant 0 : index
    %c0_6 = arith.constant 0 : index
    %3 = vector.load %arg4[%c0_5, %c0_6] : memref<16x128xf32, #tpu.memory_space<vmem>>, vector<16x128xf32>
    %c0_7 = arith.constant 0 : index
    %c0_8 = arith.constant 0 : index
    %4 = vector.load %arg5[%c0_7, %c0_8] : memref<16x128xf32, #tpu.memory_space<vmem>>, vector<16x128xf32>
    %5 = arith.addf %0, %1 : vector<16x128xf32>
    %c0_9 = arith.constant 0 : index
    %c0_10 = arith.constant 0 : index
    %6 = vector.load %arg6[%c0_9, %c0_10] : memref<16x128xf32, #tpu.memory_space<vmem>>, vector<16x128xf32>
    tpu.vector_store %arg6[%c0_9, %c0_10], %5 {strides = array<i32>} : memref<16x128xf32, #tpu.memory_space<vmem>>, vector<16x128xf32>,
    %7 = arith.subf %2, %3 : vector<16x128xf32>
    %c0_11 = arith.constant 0 : index
    %c0_12 = arith.constant 0 : index
    %8 = vector.load %arg7[%c0_11, %c0_12] : memref<16x128xf32, #tpu.memory_space<vmem>>, vector<16x128xf32>
    tpu.vector_store %arg7[%c0_11, %c0_12], %7 {strides = array<i32>} : memref<16x128xf32, #tpu.memory_space<vmem>>, vector<16x128xf32>,
    %9 = arith.mulf %0, %1 : vector<16x128xf32>
    %c0_13 = arith.constant 0 : index
    %c0_14 = arith.constant 0 : index
    %10 = vector.load %arg8[%c0_13, %c0_14] : memref<16x128xf32, #tpu.memory_space<vmem>>, vector<16x128xf32>
    tpu.vector_store %arg8[%c0_13, %c0_14], %9 {strides = array<i32>} : memref<16x128xf32, #tpu.memory_space<vmem>>, vector<16x128xf32>,
    %cst = arith.constant 9.99999993E-9 : f32
    %11 = vector.broadcast %cst : f32 to vector<16x128xf32>
    %12 = arith.addf %1, %11 : vector<16x128xf32>
    %13 = arith.divf %4, %12 : vector<16x128xf32>
    %c0_15 = arith.constant 0 : index
    %c0_16 = arith.constant 0 : index
    %14 = vector.load %arg9[%c0_15, %c0_16] : memref<16x128xf32, #tpu.memory_space<vmem>>, vector<16x128xf32>
    tpu.vector_store %arg9[%c0_15, %c0_16], %13 {strides = array<i32>} : memref<16x128xf32, #tpu.memory_space<vmem>>, vector<16x128xf32>,
    %15 = arith.cmpf ogt, %0, %2 : vector<16x128xf32>
    %c0_17 = arith.constant 0 : index
    %c0_18 = arith.constant 0 : index
    %16 = vector.load %arg10[%c0_17, %c0_18] : memref<16x128xi32, #tpu.memory_space<vmem>>, vector<16x128xi32>
    %17 = arith.extui %15 : vector<16x128xi1> to vector<16x128xi32>
    %cst_19 = arith.constant dense<0> : vector<16x128xi32>
    %18 = arith.cmpi ne, %16, %cst_19 : vector<16x128xi32>
    tpu.vector_store %arg10[%c0_17, %c0_18], %17 {strides = array<i32>} : memref<16x128xi32, #tpu.memory_space<vmem>>, vector<16x128xi32>,
    %19 = arith.cmpf olt, %3, %4 : vector<16x128xf32>
    %c0_20 = arith.constant 0 : index
    %c0_21 = arith.constant 0 : index
    %20 = vector.load %arg11[%c0_20, %c0_21] : memref<16x128xi32, #tpu.memory_space<vmem>>, vector<16x128xi32>
    %21 = arith.extui %19 : vector<16x128xi1> to vector<16x128xi32>
    %cst_22 = arith.constant dense<0> : vector<16x128xi32>
    %22 = arith.cmpi ne, %20, %cst_22 : vector<16x128xi32>
    tpu.vector_store %arg11[%c0_20, %c0_21], %21 {strides = array<i32>} : memref<16x128xi32, #tpu.memory_space<vmem>>, vector<16x128xi32>,
    %23 = arith.cmpf oeq, %0, %1 : vector<16x128xf32>
    %c0_23 = arith.constant 0 : index
    %c0_24 = arith.constant 0 : index
    %24 = vector.load %arg12[%c0_23, %c0_24] : memref<16x128xi32, #tpu.memory_space<vmem>>, vector<16x128xi32>
    %25 = arith.extui %23 : vector<16x128xi1> to vector<16x128xi32>
    %cst_25 = arith.constant dense<0> : vector<16x128xi32>
    %26 = arith.cmpi ne, %24, %cst_25 : vector<16x128xi32>
    tpu.vector_store %arg12[%c0_23, %c0_24], %25 {strides = array<i32>} : memref<16x128xi32, #tpu.memory_space<vmem>>, vector<16x128xi32>,
    return
  }
  func.func @transform_0(%arg0: i32) -> (i32, i32) {
    %c0_i32 = arith.constant 0 : i32
    %c0_i32_0 = arith.constant 0 : i32
    return %arg0, %c0_i32 : i32, i32
  }
  func.func @transform_1(%arg0: i32) -> (i32, i32) {
    %c0_i32 = arith.constant 0 : i32
    %c0_i32_0 = arith.constant 0 : i32
    return %arg0, %c0_i32 : i32, i32
  }
  func.func @transform_2(%arg0: i32) -> (i32, i32) {
    %c0_i32 = arith.constant 0 : i32
    %c0_i32_0 = arith.constant 0 : i32
    return %arg0, %c0_i32 : i32, i32
  }
  func.func @transform_3(%arg0: i32) -> (i32, i32) {
    %c0_i32 = arith.constant 0 : i32
    %c0_i32_0 = arith.constant 0 : i32
    return %arg0, %c0_i32 : i32, i32
  }
  func.func @transform_4(%arg0: i32) -> (i32, i32) {
    %c0_i32 = arith.constant 0 : i32
    %c0_i32_0 = arith.constant 0 : i32
    return %arg0, %c0_i32 : i32, i32
  }
  func.func @transform_5(%arg0: i32) -> (i32, i32) {
    %c0_i32 = arith.constant 0 : i32
    %c0_i32_0 = arith.constant 0 : i32
    return %arg0, %c0_i32 : i32, i32
  }
  func.func @transform_6(%arg0: i32) -> (i32, i32) {
    %c0_i32 = arith.constant 0 : i32
    %c0_i32_0 = arith.constant 0 : i32
    return %arg0, %c0_i32 : i32, i32
  }
  func.func @transform_7(%arg0: i32) -> (i32, i32) {
    %c0_i32 = arith.constant 0 : i32
    %c0_i32_0 = arith.constant 0 : i32
    return %arg0, %c0_i32 : i32, i32
  }
  func.func @transform_8(%arg0: i32) -> (i32, i32) {
    %c0_i32 = arith.constant 0 : i32
    %c0_i32_0 = arith.constant 0 : i32
    return %arg0, %c0_i32 : i32, i32
  }
  func.func @transform_9(%arg0: i32) -> (i32, i32) {
    %c0_i32 = arith.constant 0 : i32
    %c0_i32_0 = arith.constant 0 : i32
    return %arg0, %c0_i32 : i32, i32
  }
  func.func @transform_10(%arg0: i32) -> (i32, i32) {
    %c0_i32 = arith.constant 0 : i32
    %c0_i32_0 = arith.constant 0 : i32
    return %arg0, %c0_i32 : i32, i32
  }
  func.func @transform_11(%arg0: i32) -> (i32, i32) {
    %c0_i32 = arith.constant 0 : i32
    %c0_i32_0 = arith.constant 0 : i32
    return %arg0, %c0_i32 : i32, i32
  }
}

</mosaic_0001>

<llo_original>
// kernel: _lambda_.1
$region0: #{_lambda_.1}
  #allocation0 [shape = 'u32[]', space=smem, size = 0x4, offset = 0x4, fixed_abs, tag = 'smem constant byte address 0x4 - core index']
  #allocation1 [shape = 'u32[72,128]{1,0:T(1,128)}', space=vmem, size = 0x9000, scoped, tag = 'internal scratch']
  %s0 = inlined_call_operand.vmem [shape: f32[16,128], index: 0, kind: input, shape index: {}]
  %s1 = inlined_call_operand.vmem [shape: f32[16,128], index: 1, kind: input, shape index: {}]
  %s2 = inlined_call_operand.vmem [shape: f32[16,128], index: 2, kind: input, shape index: {}]
  %s3 = inlined_call_operand.vmem [shape: f32[16,128], index: 3, kind: input, shape index: {}]
  %s4 = inlined_call_operand.vmem [shape: f32[16,128], index: 4, kind: input, shape index: {}]
  %s5 = inlined_call_operand.vmem [shape: f32[16,128], index: 5, kind: output, shape index: {0}]
  %s6 = inlined_call_operand.vmem [shape: f32[16,128], index: 6, kind: output, shape index: {1}]
  %s7 = inlined_call_operand.vmem [shape: f32[16,128], index: 7, kind: output, shape index: {2}]
  %s8 = inlined_call_operand.vmem [shape: f32[16,128], index: 8, kind: output, shape index: {3}]
  %s9 = inlined_call_operand.vmem [shape: s32[16,128], index: 9, kind: output, shape index: {4}]
  %s10 = inlined_call_operand.vmem [shape: s32[16,128], index: 10, kind: output, shape index: {5}]
  %s11 = inlined_call_operand.vmem [shape: s32[16,128], index: 11, kind: output, shape index: {6}]
  %12 = xla_tuple %s5, %s6, %s7, %s8, %s9, %s10, %s11
  %s13 = sld [smem:[#allocation0]]
  $region78: #{_lambda_.1} parent=0
    _
  %s15 = ssub.s32 1, %s13
  %s16 = scalar_select 0, %s15, %s13
  // Predicated region
  $region2: #{_lambda_.1} parent=0 // pred_check
    _
  $region3: #{_lambda_.1} parent=0 // pred_check_branch
    %18 = sbr.rel (0) target = $region5
  $region4: #{_lambda_.1} parent=0 // pred_region
    _
  $region5: #{_lambda_.1} parent=0 // pred_fallthru
    _
  // Predicated region
  $region6: #{_lambda_.1} parent=0 // pred_check
    _
  $region7: #{_lambda_.1} parent=0 // pred_check_branch
    %20 = sbr.rel (0) target = $region9
  $region8: #{_lambda_.1} parent=0 // pred_region
    _
  $region9: #{_lambda_.1} parent=0 // pred_fallthru
    _
  // Predicated region
  $region10: #{_lambda_.1} parent=0 // pred_check
    _
  $region11: #{_lambda_.1} parent=0 // pred_check_branch
    %22 = sbr.rel (0) target = $region13
  $region12: #{_lambda_.1} parent=0 // pred_region
    _
  $region13: #{_lambda_.1} parent=0 // pred_fallthru
    _
  // Predicated region
  $region14: #{_lambda_.1} parent=0 // pred_check
    _
  $region15: #{_lambda_.1} parent=0 // pred_check_branch
    %24 = sbr.rel (0) target = $region17
  $region16: #{_lambda_.1} parent=0 // pred_region
    _
  $region17: #{_lambda_.1} parent=0 // pred_fallthru
    _
  // Predicated region
  $region18: #{_lambda_.1} parent=0 // pred_check
    _
  $region19: #{_lambda_.1} parent=0 // pred_check_branch
    %26 = sbr.rel (0) target = $region21
  $region20: #{_lambda_.1} parent=0 // pred_region
    _
  $region21: #{_lambda_.1} parent=0 // pred_fallthru
    _
  %v27 = vld [vmem:[%s0] sm:$0xff]
  %v28 = vld [vmem:[%s0 + $0x8] sm:$0xff]
  %v29 = vld [vmem:[%s1] sm:$0xff]
  %v30 = vld [vmem:[%s1 + $0x8] sm:$0xff]
  %v31 = vld [vmem:[%s2] sm:$0xff]
  %v32 = vld [vmem:[%s2 + $0x8] sm:$0xff]
  %v33 = vld [vmem:[%s3] sm:$0xff]
  %v34 = vld [vmem:[%s3 + $0x8] sm:$0xff]
  %v35 = vld [vmem:[%s4] sm:$0xff]
  %v36 = vld [vmem:[%s4 + $0x8] sm:$0xff]
  %v37 = vadd.f32 %v27, %v29
  %v38 = vadd.f32 %v28, %v30
  %39 = vst [vmem:[%s5] sm:$0xff] %v37
  %40 = vst [vmem:[%s5 + $0x8] sm:$0xff] %v38
  %v41 = vsub.f32 %v31, %v33
  %v42 = vsub.f32 %v32, %v34
  %43 = vst [vmem:[%s6] sm:$0xff] %v41
  %44 = vst [vmem:[%s6 + $0x8] sm:$0xff] %v42
  %v45 = vmul.f32 %v27, %v29
  %v46 = vmul.f32 %v28, %v30
  %47 = vst [vmem:[%s7] sm:$0xff] %v45
  %48 = vst [vmem:[%s7 + $0x8] sm:$0xff] %v46
  %v49 = vadd.f32 %v29, 1e-08
  %v50 = vadd.f32 %v30, 1e-08
  %v51 = vrcp.pop %v49
  %v52 = vmul.f32 %v49, %v51
  %v53 = vsub.f32 1.0, %v52
  %v54 = vmul.f32 %v51, %v53
  %v55 = vadd.f32 %v51, %v54
  %vm56 = vweird.f32 %v49
  %vm57 = vweird.f32 %v51
  %vm58 = vmor %vm56, %vm57
  %v59 = vsel %vm58, %v51, %v55
  %v60 = vand.u32 2147483647, %v49
  %vm61 = vcmp.eq.f32.partialorder %v60, 8.507059e+37
  %v62 = vand.u32 %v49, 2147483648
  %v63 = vor.u32 1.1754944e-38, %v62
  %v64 = vsel %vm61, %v63, %v59
  %v65 = vmul.f32 %v35, %v64
  %v66 = vrcp.pop %v50
  %v67 = vmul.f32 %v50, %v66
  %v68 = vsub.f32 1.0, %v67
  %v69 = vmul.f32 %v66, %v68
  %v70 = vadd.f32 %v66, %v69
  %vm71 = vweird.f32 %v50
  %vm72 = vweird.f32 %v66
  %vm73 = vmor %vm71, %vm72
  %v74 = vsel %vm73, %v66, %v70
  %v75 = vand.u32 2147483647, %v50
  %vm76 = vcmp.eq.f32.partialorder %v75, 8.507059e+37
  %v77 = vand.u32 %v50, 2147483648
  %v78 = vor.u32 1.1754944e-38, %v77
  %v79 = vsel %vm76, %v78, %v74
  %v80 = vmul.f32 %v36, %v79
  %81 = vst [vmem:[%s8] sm:$0xff] %v65
  %82 = vst [vmem:[%s8 + $0x8] sm:$0xff] %v80
  %vm83 = vcmp.gt.f32.partialorder %v27, %v31
  %vm84 = vcmp.gt.f32.partialorder %v28, %v32
  %v85 = vsel %vm83, 1, 0
  %v86 = vsel %vm84, 1, 0
  %87 = vst [vmem:[%s9] sm:$0xff] %v85
  %88 = vst [vmem:[%s9 + $0x8] sm:$0xff] %v86
  %vm89 = vcmp.lt.f32.partialorder %v33, %v35
  %vm90 = vcmp.lt.f32.partialorder %v34, %v36
  %v91 = vsel %vm89, 1, 0
  %v92 = vsel %vm90, 1, 0
  %93 = vst [vmem:[%s10] sm:$0xff] %v91
  %94 = vst [vmem:[%s10 + $0x8] sm:$0xff] %v92
  %vm95 = vcmp.eq.f32.partialorder %v27, %v29
  %vm96 = vcmp.eq.f32.partialorder %v28, %v30
  %v97 = vsel %vm95, 1, 0
  %v98 = vsel %vm96, 1, 0
  %99 = vst [vmem:[%s11] sm:$0xff] %v97
  %100 = vst [vmem:[%s11 + $0x8] sm:$0xff] %v98
  // Predicated region
  $region22: #{_lambda_.1} parent=0 // pred_check
    _
  $region23: #{_lambda_.1} parent=0 // pred_check_branch
    %102 = sbr.rel (0) target = $region25
  $region24: #{_lambda_.1} parent=0 // pred_region
    _
  $region25: #{_lambda_.1} parent=0 // pred_fallthru
    _
  // Predicated region
  $region26: #{_lambda_.1} parent=0 // pred_check
    _
  $region27: #{_lambda_.1} parent=0 // pred_check_branch
    %104 = sbr.rel (0) target = $region29
  $region28: #{_lambda_.1} parent=0 // pred_region
    _
  $region29: #{_lambda_.1} parent=0 // pred_fallthru
    _
  // Predicated region
  $region30: #{_lambda_.1} parent=0 // pred_check
    _
  $region31: #{_lambda_.1} parent=0 // pred_check_branch
    %106 = sbr.rel (0) target = $region33
  $region32: #{_lambda_.1} parent=0 // pred_region
    _
  $region33: #{_lambda_.1} parent=0 // pred_fallthru
    _
  // Predicated region
  $region34: #{_lambda_.1} parent=0 // pred_check
    _
  $region35: #{_lambda_.1} parent=0 // pred_check_branch
    %108 = sbr.rel (0) target = $region37
  $region36: #{_lambda_.1} parent=0 // pred_region
    _
  $region37: #{_lambda_.1} parent=0 // pred_fallthru
    _
  // Predicated region
  $region38: #{_lambda_.1} parent=0 // pred_check
    _
  $region39: #{_lambda_.1} parent=0 // pred_check_branch
    %110 = sbr.rel (0) target = $region41
  $region40: #{_lambda_.1} parent=0 // pred_region
    _
  $region41: #{_lambda_.1} parent=0 // pred_fallthru
    _
  // Predicated region
  $region42: #{_lambda_.1} parent=0 // pred_check
    _
  $region43: #{_lambda_.1} parent=0 // pred_check_branch
    %112 = sbr.rel (0) target = $region45
  $region44: #{_lambda_.1} parent=0 // pred_region
    _
  $region45: #{_lambda_.1} parent=0 // pred_fallthru
    _
  // Predicated region
  $region46: #{_lambda_.1} parent=0 // pred_check
    _
  $region47: #{_lambda_.1} parent=0 // pred_check_branch
    %114 = sbr.rel (0) target = $region49
  $region48: #{_lambda_.1} parent=0 // pred_region
    _
  $region49: #{_lambda_.1} parent=0 // pred_fallthru
    _
  // Predicated region
  $region50: #{_lambda_.1} parent=0 // pred_check
    _
  $region51: #{_lambda_.1} parent=0 // pred_check_branch
    %116 = sbr.rel (0) target = $region53
  $region52: #{_lambda_.1} parent=0 // pred_region
    _
  $region53: #{_lambda_.1} parent=0 // pred_fallthru
    _
  // Predicated region
  $region54: #{_lambda_.1} parent=0 // pred_check
    _
  $region55: #{_lambda_.1} parent=0 // pred_check_branch
    %118 = sbr.rel (0) target = $region57
  $region56: #{_lambda_.1} parent=0 // pred_region
    _
  $region57: #{_lambda_.1} parent=0 // pred_fallthru
    _
  // Predicated region
  $region58: #{_lambda_.1} parent=0 // pred_check
    _
  $region59: #{_lambda_.1} parent=0 // pred_check_branch
    %120 = sbr.rel (0) target = $region61
  $region60: #{_lambda_.1} parent=0 // pred_region
    _
  $region61: #{_lambda_.1} parent=0 // pred_fallthru
    _
  // Predicated region
  $region62: #{_lambda_.1} parent=0 // pred_check
    _
  $region63: #{_lambda_.1} parent=0 // pred_check_branch
    %122 = sbr.rel (0) target = $region65
  $region64: #{_lambda_.1} parent=0 // pred_region
    _
  $region65: #{_lambda_.1} parent=0 // pred_fallthru
    _
  // Predicated region
  $region66: #{_lambda_.1} parent=0 // pred_check
    _
  $region67: #{_lambda_.1} parent=0 // pred_check_branch
    %124 = sbr.rel (0) target = $region69
  $region68: #{_lambda_.1} parent=0 // pred_region
    _
  $region69: #{_lambda_.1} parent=0 // pred_fallthru
    _
  // Predicated region
  $region70: #{_lambda_.1} parent=0 // pred_check
    _
  $region71: #{_lambda_.1} parent=0 // pred_check_branch
    %126 = sbr.rel (0) target = $region73
  $region72: #{_lambda_.1} parent=0 // pred_region
    _
  $region73: #{_lambda_.1} parent=0 // pred_fallthru
    _
  // Predicated region
  $region74: #{_lambda_.1} parent=0 // pred_check
    _
  $region75: #{_lambda_.1} parent=0 // pred_check_branch
    %128 = sbr.rel (0) target = $region77
  $region76: #{_lambda_.1} parent=0 // pred_region
    _
  $region77: #{_lambda_.1} parent=0 // pred_fallthru
    _

</llo_original>
